<compile_context>
chip_gen: v7x
topology: tpu7x:2x2x1
jax: 0.10.0
libtpu: 0.0.40
codegen_flags: <defaults>
</compile_context>

<pallas_src>
import jax
import jax.numpy as jnp
from jax.experimental import pallas as pl
from jax.experimental.pallas import tpu as pltpu


def _round_up(a, b):
    return ((a + b - 1) // b) * b


def _pca_kernel_single(x_ref, comp_ref, bias_ref, o_ref):
    # Scaler / mean / whiten already folded into comp_ref and bias_ref.
    o_ref[...] = (
        jnp.dot(x_ref[...], comp_ref[...], preferred_element_type=jnp.float32)
        - bias_ref[...]                                   # broadcast (1, Kp)
    ).astype(o_ref.dtype)


def _pca_kernel_reduce(x_ref, comp_ref, bias_ref, o_ref):
    # Contraction tiled over grid axis 1; o_ref (f32) is the resident
    # accumulator (same output block index for every k).
    k = pl.program_id(1)

    @pl.when(k == 0)
    def _():
        o_ref[...] = jnp.zeros_like(o_ref) - bias_ref[...]

    o_ref[...] += jnp.dot(x_ref[...], comp_ref[...],
                          preferred_element_type=jnp.float32)


def pca_forward(x, scale_mean, scale, mean, components, explained_variance,
                *, has_scale=True, whiten=True, tm_max=512, tk_max=512,
                vmem_budget_bytes=28 * 1024 * 1024, use_bf16=False):
    """x: (N, D) f32; components: (D, K) f32. Returns (N, K) f32."""
    N, D = x.shape
    K = components.shape[1]

    # ---- one-time fold of scaler / mean / whiten into (C_eff, bias) ----
    comp_w = components.astype(jnp.float32)
    if whiten:
        comp_w = comp_w / jnp.sqrt(explained_variance.astype(jnp.float32))[None, :]
    mean_b = jnp.broadcast_to(mean.astype(jnp.float32), (D,))
    if has_scale:
        # sklearn's StandardScaler guards constant features (scale_ == 0 -> 1);
        # mirror that so the precomputed 1/scale path never produces inf.
        sc = scale.astype(jnp.float32)
        inv_scale = jnp.where(sc == 0, 1.0, 1.0 / sc)
        shift = scale_mean.astype(jnp.float32) * inv_scale + mean_b   # (D,)
        comp_eff = inv_scale[:, None] * comp_w                        # (D, K)
    else:
        shift = mean_b
        comp_eff = comp_w
    bias = (shift @ comp_w).reshape(1, K)                             # (1, K)

    # ---- pad K to a lane-dense multiple of 128 for the output stores ----
    Kp = _round_up(K, 128)
    if Kp != K:
        comp_eff = jnp.pad(comp_eff, ((0, 0), (0, Kp - K)))
        bias = jnp.pad(bias, ((0, 0), (0, Kp - K)))

    # ---- pick the contraction tile (single block for small D) ----
    tk_max = max(128, (tk_max // 128) * 128)     # keep tk a multiple of 128
    if D <= tk_max:
        tk, Dp, kt = D, D, 1
    else:
        tk = tk_max
        Dp = _round_up(D, tk)
        kt = Dp // tk

    x_in = x.astype(jnp.float32)
    if Dp != D:
        x_in = jnp.pad(x_in, ((0, 0), (0, Dp - D)))
        comp_eff = jnp.pad(comp_eff, ((0, Dp - D), (0, 0)))

    # ---- pick the row tile from a VMEM budget (double-buffered streams) ----
    fixed_bytes = 2 * (tk * Kp + Kp) * 4          # components + bias (2 bufs)
    per_row_bytes = (2 * tk + 2 * Kp) * 4         # x tile (2 bufs) + out tile
    cap = max(8, (vmem_budget_bytes - fixed_bytes) // per_row_bytes)
    tm = min(tm_max, int(cap), _round_up(N, 8))
    tm = max(8, (tm // 8) * 8)

    # ---- pad N to a multiple of tm (no divisibility requirement) ----
    Np = _round_up(N, tm)
    if Np != N:
        x_in = jnp.pad(x_in, ((0, Np - N), (0, 0)))

    comp_in = comp_eff
    if use_bf16:  # optional: feed the MXU bf16 (v6e/v7x); validate tolerance.
        x_in = x_in.astype(jnp.bfloat16)
        comp_in = comp_in.astype(jnp.bfloat16)

    if kt == 1:
        grid = (Np // tm,)
        kernel = _pca_kernel_single
        in_specs = [
            pl.BlockSpec((tm, Dp), lambda i: (i, 0)),     # x row tile
            pl.BlockSpec((Dp, Kp), lambda i: (0, 0)),     # folded components
            pl.BlockSpec((1, Kp), lambda i: (0, 0)),      # folded bias
        ]
        out_specs = pl.BlockSpec((tm, Kp), lambda i: (i, 0))
        dim_sem = ("parallel",)
    else:
        grid = (Np // tm, kt)                              # reduction axis last
        kernel = _pca_kernel_reduce
        in_specs = [
            pl.BlockSpec((tm, tk), lambda i, k: (i, k)),   # x row/col tile
            pl.BlockSpec((tk, Kp), lambda i, k: (k, 0)),   # components slab
            pl.BlockSpec((1, Kp), lambda i, k: (0, 0)),    # folded bias
        ]
        out_specs = pl.BlockSpec((tm, Kp), lambda i, k: (i, 0))
        dim_sem = ("parallel", "arbitrary")

    out = pl.pallas_call(
        kernel,
        out_shape=jax.ShapeDtypeStruct((Np, Kp), jnp.float32),
        grid_spec=pltpu.PrefetchScalarGridSpec(
            num_scalar_prefetch=0,
            grid=grid,
            in_specs=in_specs,
            out_specs=out_specs,
        ),
        compiler_params=pltpu.CompilerParams(
            dimension_semantics=dim_sem,
            vmem_limit_bytes=48 * 1024 * 1024,
        ),
    )(x_in, comp_in, bias)

    return out[:N, :K]


def pca_forward_ref(x, scale_mean, scale, mean, components, explained_variance,
                    *, has_scale=True, whiten=True):
    if has_scale:
        x = (x - scale_mean) / scale
    x = x - mean
    xt = x @ components
    if whiten:
        xt = xt / jnp.sqrt(explained_variance)
    return xt


if __name__ == "__main__":
    # Deterministic synthetic "fitted" PCA / StandardScaler parameters.
    N, D, K = 16, 32, 8
    key = jax.random.PRNGKey(0)
    kx, kc, kev, ksm, ksc, kmn, kx2, kc2, ksm2, ksc2, kmn2 = jax.random.split(key, 11)

    x = jax.random.normal(kx, (N, D), dtype=jnp.float32)
    components = jax.random.normal(kc, (D, K), dtype=jnp.float32) / jnp.sqrt(D)
    explained_variance = jax.random.uniform(kev, (K,), dtype=jnp.float32,
                                            minval=0.5, maxval=2.0)
    scale_mean = jax.random.normal(ksm, (D,), dtype=jnp.float32)
    scale = jax.random.uniform(ksc, (D,), dtype=jnp.float32,
                               minval=0.5, maxval=1.5)
    mean = jax.random.normal(kmn, (D,), dtype=jnp.float32) * 0.1

    # 1) scale + whiten, single-block contraction path.
    out = pca_forward(x, scale_mean, scale, mean, components,
                      explained_variance, has_scale=True, whiten=True)
    out = jax.block_until_ready(out)
    ref = pca_forward_ref(x, scale_mean, scale, mean, components,
                          explained_variance, has_scale=True, whiten=True)
    assert out.shape == (N, K)
    assert jnp.allclose(out, ref, atol=1e-4, rtol=1e-4), "mismatch vs reference"

    # 2) no-scaler / no-whiten path with a non-divisible N.
    out2 = pca_forward(x[:13], scale_mean, scale, mean, components,
                       explained_variance, has_scale=False, whiten=False)
    out2 = jax.block_until_ready(out2)
    ref2 = pca_forward_ref(x[:13], scale_mean, scale, mean, components,
                           explained_variance, has_scale=False, whiten=False)
    assert out2.shape == (13, K)
    assert jnp.allclose(out2, ref2, atol=1e-4, rtol=1e-4), "mismatch (no scale)"

    # 3) tiled-contraction path (D > tk_max -> reduction grid axis).
    D2 = 256
    x2 = jax.random.normal(kx2, (N, D2), dtype=jnp.float32)
    components2 = jax.random.normal(kc2, (D2, K), dtype=jnp.float32) / jnp.sqrt(D2)
    scale_mean2 = jax.random.normal(ksm2, (D2,), dtype=jnp.float32)
    scale2 = jax.random.uniform(ksc2, (D2,), dtype=jnp.float32,
                                minval=0.5, maxval=1.5)
    mean2 = jax.random.normal(kmn2, (D2,), dtype=jnp.float32) * 0.1
    out3 = pca_forward(x2, scale_mean2, scale2, mean2, components2,
                       explained_variance, has_scale=True, whiten=True,
                       tk_max=128)   # forces kt = 2 at D2 = 256
    out3 = jax.block_until_ready(out3)
    ref3 = pca_forward_ref(x2, scale_mean2, scale2, mean2, components2,
                           explained_variance, has_scale=True, whiten=True)
    assert out3.shape == (N, K)
    assert jnp.allclose(out3, ref3, atol=1e-4, rtol=1e-4), "mismatch (tiled D)"

    print("KERNEL_OK")
</pallas_src>

<mosaic_0001>
module attributes {stable_mosaic.version = 11 : i64} {
  func.func @_pca_kernel_single(%arg0: i32, %arg1: memref<16x32xf32, #tpu.memory_space<vmem>>, %arg2: memref<32x128xf32, #tpu.memory_space<vmem>>, %arg3: memref<1x128xf32, #tpu.memory_space<vmem>>, %arg4: memref<16x128xf32, #tpu.memory_space<vmem>>) attributes {dimension_semantics = [#tpu.dimension_semantics<parallel>], iteration_bounds = array<i64: 1>, scalar_prefetch = 0 : i64, scratch_operands = 0 : i64, tpu.core_type = #tpu.core_type<tc>, window_params = [{transform_indices = @transform_0, window_bounds = array<i64: 16, 32>}, {pipeline_mode = #tpu.pipeline_mode<synchronous>, transform_indices = @transform_1, window_bounds = array<i64: 32, 128>}, {pipeline_mode = #tpu.pipeline_mode<synchronous>, transform_indices = @transform_2, window_bounds = array<i64: 1, 128>}, {transform_indices = @transform_3, window_bounds = array<i64: 16, 128>}]} {
    %c0 = arith.constant 0 : index
    %c0_0 = arith.constant 0 : index
    %0 = vector.load %arg1[%c0, %c0_0] : memref<16x32xf32, #tpu.memory_space<vmem>>, vector<16x32xf32>
    %c0_1 = arith.constant 0 : index
    %c0_2 = arith.constant 0 : index
    %1 = vector.load %arg2[%c0_1, %c0_2] : memref<32x128xf32, #tpu.memory_space<vmem>>, vector<32x128xf32>
    %cst = arith.constant dense<0.000000e+00> : vector<16x128xf32>
    %2 = tpu.matmul %0, %1, %cst {dimension_numbers = #tpu.dot_dimension_numbers<[1], [0], [0], [1], [0, 0, 1, 1], [], []>} : vector<16x32xf32>, vector<32x128xf32>, vector<16x128xf32> -> vector<16x128xf32>
    %c0_3 = arith.constant 0 : index
    %c0_4 = arith.constant 0 : index
    %3 = vector.load %arg3[%c0_3, %c0_4] : memref<1x128xf32, #tpu.memory_space<vmem>>, vector<1x128xf32>
    %4 = vector.broadcast %3 : vector<1x128xf32> to vector<16x128xf32>
    %5 = arith.subf %2, %4 : vector<16x128xf32>
    %c0_5 = arith.constant 0 : index
    %c0_6 = arith.constant 0 : index
    %6 = vector.load %arg4[%c0_5, %c0_6] : memref<16x128xf32, #tpu.memory_space<vmem>>, vector<16x128xf32>
    tpu.vector_store %arg4[%c0_5, %c0_6], %5 {strides = array<i32>} : memref<16x128xf32, #tpu.memory_space<vmem>>, vector<16x128xf32>,
    return
  }
  func.func @transform_0(%arg0: i32) -> (i32, i32) {
    %c0_i32 = arith.constant 0 : i32
    %c0_i32_0 = arith.constant 0 : i32
    return %arg0, %c0_i32 : i32, i32
  }
  func.func @transform_1(%arg0: i32) -> (i32, i32) {
    %c0_i32 = arith.constant 0 : i32
    %c0_i32_0 = arith.constant 0 : i32
    %c0_i32_1 = arith.constant 0 : i32
    return %c0_i32, %c0_i32_0 : i32, i32
  }
  func.func @transform_2(%arg0: i32) -> (i32, i32) {
    %c0_i32 = arith.constant 0 : i32
    %c0_i32_0 = arith.constant 0 : i32
    %c0_i32_1 = arith.constant 0 : i32
    return %c0_i32, %c0_i32_0 : i32, i32
  }
  func.func @transform_3(%arg0: i32) -> (i32, i32) {
    %c0_i32 = arith.constant 0 : i32
    %c0_i32_0 = arith.constant 0 : i32
    return %arg0, %c0_i32 : i32, i32
  }
}

</mosaic_0001>

<llo_original>
// kernel: tpu_custom_call.1
$region0: #{tpu_custom_call.1}
  #allocation0 [shape = 'u32[]', space=smem, size = 0x4, offset = 0x4, fixed_abs, tag = 'smem constant byte address 0x4 - core index']
  #allocation1 [shape = 'u32[144,128]{1,0:T(1,128)}', space=vmem, size = 0x12000, scoped, tag = 'internal scratch']
  %s0 = inlined_call_operand.hbm [shape: f32[16,32], index: 0, kind: input, shape index: {}]
  %s1 = inlined_call_operand.hbm [shape: f32[32,128], index: 1, kind: input, shape index: {}]
  %s2 = inlined_call_operand.vmem [shape: f32[1,128], index: 2, kind: input, shape index: {}]
  %s3 = inlined_call_operand.hbm [shape: f32[16,128], index: 3, kind: output, shape index: {}]
  %s4 = sld [smem:[#allocation0]]
  $region30: #{tpu_custom_call.1} parent=0
    _
  %s6 = ssub.s32 1, %s4
  %s7 = scalar_select 0, %s6, %s4
  $region1: #{tpu_custom_call.1} parent=0
    #allocation2 [shape = 'u8[8192]{0}', space=vmem, size = 0x2000, scoped, tag = 'input window, operand 0, single buffered']
    #allocation3 [shape = 's32[1]{0}', space=sflag, size = 0x4, scoped, tag = 'scoped memory for tpu_custom_call.1']
    #allocation4 [shape = 's32[1]{0}', space=sflag, size = 0x4, scoped, tag = 'scoped memory for tpu_custom_call.1']
    #allocation5 [shape = 'u8[16384]{0}', space=vmem, size = 0x4000, scoped, tag = 'input window, operand 1, single buffered']
    #allocation6 [shape = 's32[1]{0}', space=sflag, size = 0x4, scoped, tag = 'scoped memory for tpu_custom_call.1']
    #allocation7 [shape = 'u8[8192]{0}', space=vmem, size = 0x2000, scoped, tag = 'output window, operand 0, single buffered']
    %8 = vsyncpa [#allocation3], 0
    %9 = vsyncpa [#allocation6], 0
    %10 = vsyncpa [#allocation4], 0
    // Predicated region
    $region2: #{tpu_custom_call.1} parent=1 // pred_check
      _
    $region3: #{tpu_custom_call.1} parent=1 // pred_check_branch
      %12 = sbr.rel (0) target = $region5
    $region4: #{tpu_custom_call.1} parent=1 // pred_region
      %s14 = ssub.s32 256, 256
      %15 = vsyncadd [#allocation3], %s14
      %s16 = sshll.u32 [#allocation2], 4
      %s17 = int_to_ptr.vmem [resolvable:$true] %s16
      %22 = dma.hbm_to_vmem [thread:$0]  %s0, 256, %s17, [#allocation3], 128, 128, 8
    $region5: #{tpu_custom_call.1} parent=1 // pred_fallthru
      _
    // Predicated region
    $region6: #{tpu_custom_call.1} parent=1 // pred_check
      _
    $region7: #{tpu_custom_call.1} parent=1 // pred_check_branch
      %24 = sbr.rel (0) target = $region9
    $region8: #{tpu_custom_call.1} parent=1 // pred_region
      %s26 = ssub.s32 512, 512
      %27 = vsyncadd [#allocation6], %s26
      %s28 = sshll.u32 [#allocation5], 4
      %s29 = int_to_ptr.vmem [resolvable:$true] %s28
      %34 = dma.hbm_to_vmem [thread:$0]  %s1, 512, %s29, [#allocation6], 128, 128, 8
    $region9: #{tpu_custom_call.1} parent=1 // pred_fallthru
      _
    // Predicated region
    $region10: #{tpu_custom_call.1} parent=1 // pred_check
      _
    $region11: #{tpu_custom_call.1} parent=1 // pred_check_branch
      %36 = sbr.rel (0) target = $region13
    $region12: #{tpu_custom_call.1} parent=1 // pred_region
      _
    $region13: #{tpu_custom_call.1} parent=1 // pred_fallthru
      _
    // Predicated region
    $region14: #{tpu_custom_call.1} parent=1 // pred_check
      _
    $region15: #{tpu_custom_call.1} parent=1 // pred_check_branch
      %38 = sbr.rel (0) target = $region17
    $region16: #{tpu_custom_call.1} parent=1 // pred_region
      %39 = dma.done [#allocation3], 256
    $region17: #{tpu_custom_call.1} parent=1 // pred_fallthru
      _
    // Predicated region
    $region18: #{tpu_custom_call.1} parent=1 // pred_check
      _
    $region19: #{tpu_custom_call.1} parent=1 // pred_check_branch
      %41 = sbr.rel (0) target = $region21
    $region20: #{tpu_custom_call.1} parent=1 // pred_region
      %42 = dma.done [#allocation6], 512
    $region21: #{tpu_custom_call.1} parent=1 // pred_fallthru
      _
    %v43 = vld [vmem:[#allocation2] sm:$0xff]
    %v44 = vld [vmem:[#allocation2 + $0x8] sm:$0xff]
    %v45 = vld [vmem:[#allocation5] sm:$0xff]
    %v46 = vld [vmem:[#allocation5 + $0x8] sm:$0xff]
    %v47 = vld [vmem:[#allocation5 + $0x10] sm:$0xff]
    %v48 = vld [vmem:[#allocation5 + $0x18] sm:$0xff]
    %vm49 = vcmask 261120
    %v51 = vsel %vm49, %v43, 0
    %v54 = vsel %vm49, %v44, 0
    %56 = vmatprep.subr.mxu0 0.0
    %57 = vmatpush1.msra.mxu0 %v45
    %58 = vmatprep.subr.mxu0 0.0
    %59 = vmatpush1.msra.mxu0 %v46
    %60 = vmatprep.subr.mxu0 0.0
    %61 = vmatpush1.msra.mxu0 %v47
    %62 = vmatprep.subr.mxu0 0.0
    %63 = vmatpush1.msra.mxu0 %v48
    %64 = vmatprep.subr.mxu0 0.0
    %65 = vmatpush1.msra.mxu0 0.0
    %66 = vmatprep.subr.mxu0 0.0
    %67 = vmatpush1.msra.mxu0 0.0
    %68 = vmatprep.subr.mxu0 0.0
    %69 = vmatpush1.msra.mxu0 0.0
    %70 = vmatprep.subr.mxu0 0.0
    %71 = vmatpush1.msra.mxu0 0.0
    %72 = vmatprep.subr.mxu0 0.0
    %73 = vmatpush1.msra.mxu0 0.0
    %74 = vmatprep.subr.mxu0 0.0
    %75 = vmatpush1.msra.mxu0 0.0
    %76 = vmatprep.subr.mxu0 0.0
    %77 = vmatpush1.msra.mxu0 0.0
    %78 = vmatprep.subr.mxu0 0.0
    %79 = vmatpush1.msra.mxu0 0.0
    %80 = vmatprep.subr.mxu0 0.0
    %81 = vmatpush1.msra.mxu0 0.0
    %82 = vmatprep.subr.mxu0 0.0
    %83 = vmatpush1.msra.mxu0 0.0
    %84 = vmatprep.subr.mxu0 0.0
    %85 = vmatpush1.msra.mxu0 0.0
    %86 = vmatprep.subr.mxu0 0.0
    %87 = vmatpush1.msra.mxu0 0.0
    %88 = vmatprep.subr.mxu0 0.0
    %89 = vmatpush1.msra.mxu0 0.0
    %90 = vmatprep.subr.mxu0 0.0
    %91 = vmatpush1.msra.mxu0 0.0
    %92 = vmatprep.subr.mxu0 0.0
    %93 = vmatpush1.msra.mxu0 0.0
    %94 = vmatprep.subr.mxu0 0.0
    %95 = vmatpush1.msra.mxu0 0.0
    %96 = vmatprep.subr.mxu0 0.0
    %97 = vmatpush1.msra.mxu0 0.0
    %98 = vmatprep.subr.mxu0 0.0
    %99 = vmatpush1.msra.mxu0 0.0
    %100 = vmatprep.subr.mxu0 0.0
    %101 = vmatpush1.msra.mxu0 0.0
    %102 = vmatprep.subr.mxu0 0.0
    %103 = vmatpush1.msra.mxu0 0.0
    %104 = vmatprep.subr.mxu0 0.0
    %105 = vmatpush1.msra.mxu0 0.0
    %106 = vmatprep.subr.mxu0 0.0
    %107 = vmatpush1.msra.mxu0 0.0
    %108 = vmatprep.subr.mxu0 0.0
    %109 = vmatpush1.msra.mxu0 0.0
    %110 = vmatprep.subr.mxu0 0.0
    %111 = vmatpush1.msra.mxu0 0.0
    %112 = vmatprep.subr.mxu0 0.0
    %113 = vmatpush1.msra.mxu0 0.0
    %114 = vmatprep.subr.mxu0 0.0
    %115 = vmatpush1.msra.mxu0 0.0
    %116 = vmatprep.subr.mxu0 0.0
    %117 = vmatpush1.msra.mxu0 0.0
    %118 = vmatprep.subr.mxu0 0.0
    %119 = vmatpush1.msra.mxu0 0.0
    %120 = vmatprep.mubr.f32.mxu0 0.0
    %121 = vmatmul.mubr.f32.gmra.mrb[0].mxu0 %v51
    %v122 = vpop.f32.mrb[0].mxu0
    %v123 = vadd.f32 0.0, %v122
    %v124 = vpop.f32.mrb[0].mxu0
    %125 = vmatprep.mubr.f32.mxu0 0.0
    %126 = vmatmul.mubr.f32.gmra.mrb[0].mxu0 %v54
    %v127 = vpop.f32.mrb[0].mxu0
    %v128 = vadd.f32 0.0, %v127
    %v129 = vpop.f32.mrb[0].mxu0
    %130 = vdwg.mxu0
    %v131 = vld [vmem:[%s2] sm:$0x1]
    %v133 = vlaneseq
    %v134 = vshrl.u32 %v133, 7
    %v135 = vsub.s32 0, %v134
    %v136 = vrot.slane %v131, %v135
    %v138 = vsub.f32 %v123, %v136
    %v139 = vsub.f32 %v128, %v136
    %140 = vst [vmem:[#allocation7] sm:$0xff] %v138
    %141 = vst [vmem:[#allocation7 + $0x8] sm:$0xff] %v139
    // Predicated region
    $region22: #{tpu_custom_call.1} parent=1 // pred_check
      _
    $region23: #{tpu_custom_call.1} parent=1 // pred_check_branch
      %143 = sbr.rel (0) target = $region25
    $region24: #{tpu_custom_call.1} parent=1 // pred_region
      %s145 = ssub.s32 256, 256
      %146 = vsyncadd [#allocation4], %s145
      %s147 = sshll.u32 [#allocation7], 4
      %s148 = int_to_ptr.vmem [resolvable:$true] %s147
      %153 = dma.vmem_to_hbm [thread:$0]  %s148, 256, %s3, [#allocation4], 128, 128, 8
    $region25: #{tpu_custom_call.1} parent=1 // pred_fallthru
      _
    // Predicated region
    $region26: #{tpu_custom_call.1} parent=1 // pred_check
      _
    $region27: #{tpu_custom_call.1} parent=1 // pred_check_branch
      %155 = sbr.rel (0) target = $region29
    $region28: #{tpu_custom_call.1} parent=1 // pred_region
      %156 = dma.done [#allocation4], 256
    $region29: #{tpu_custom_call.1} parent=1 // pred_fallthru
      _
    %157 = vsyncpa [#allocation3], 1
    %158 = vsyncpa [#allocation6], 1
    %159 = vsyncpa [#allocation4], 1

</llo_original>
